<compile_context>
chip_gen: v7x
topology: tpu7x:2x2x1
jax: 0.10.0
libtpu: 0.0.40
codegen_flags: <defaults>
</compile_context>

<pallas_src>
import jax
import jax.numpy as jnp
from jax.experimental import pallas as pl
from jax.experimental.pallas import tpu as pltpu

VOCAB_SIZE = 16
EMBEDDING_SIZE = 2
NUM_CLASSES = 10
NUM_FILTERS = 3
SEQ_LEN = 99                       # => conv H = 98, pooled H = 49, flatten = 3*49 = 147
HP = (SEQ_LEN - 1) // 2            # 49 pooled rows per channel
BN_EPS = 1e-5
N_PAD = 128                        # lane-dense padded output / per-channel K block

# fused SMEM scalar layout: conv_w(12) | conv_b(3) | gamma(3) | beta(3) | W_emb(32)
CW_LEN = NUM_FILTERS * 2 * EMBEDDING_SIZE          # 12
CB_OFF = CW_LEN                                    # 12
G_OFF = CB_OFF + NUM_FILTERS                       # 15
BT_OFF = G_OFF + NUM_FILTERS                       # 18
EMB_OFF = BT_OFF + NUM_FILTERS                     # 21
SCAL_LEN = EMB_OFF + VOCAB_SIZE * EMBEDDING_SIZE   # 53


def textcnn_kernel(x_ref, wbig_ref, fcb_ref, scal_ref, out_ref, slab_ref):
    # x_ref:    (B, L)        int32 VMEM -- raw token ids.
    # wbig_ref: (3*128, 128)  bf16  VMEM -- expanded fc_w.T (odd/pad rows zero).
    # fcb_ref:  (1, 128)      f32   VMEM -- fc bias, N padded.
    # scal_ref: (53,)         f32   SMEM -- conv_w|conv_b|gamma|beta|W_emb.
    # out_ref:  (B, 128)      f32   VMEM -- lane-dense padded logits.
    # slab_ref: (B, 384)      f32   VMEM scratch -- pooled acts at lane
    #                                              offsets 0 / 128 / 256.
    B, L = x_ref.shape
    H = L - 1                                   # conv output height (98)
    n = jnp.float32(B * H)                      # conv elements per channel
    eps = jnp.float32(BN_EPS)

    # --- embedding gather: vectorized one-hot select on the VPU ------------
    x = x_ref[...]                              # (B, L) int32
    e0 = jnp.zeros((B, L), jnp.float32)         # embedding dim 0
    e1 = jnp.zeros((B, L), jnp.float32)         # embedding dim 1
    for v in range(VOCAB_SIZE):
        m = x == v
        e0 = jnp.where(m, scal_ref[EMB_OFF + 2 * v + 0], e0)
        e1 = jnp.where(m, scal_ref[EMB_OFF + 2 * v + 1], e1)

    e0a, e1a = e0[:, :H], e1[:, :H]             # embedding at row h
    e0b, e1b = e0[:, 1:], e1[:, 1:]             # embedding at row h+1

    # zero the scratch so lanes 97..127 of each channel block are defined
    slab_ref[...] = jnp.zeros_like(slab_ref)

    for c in range(NUM_FILTERS):
        # conv weight W[c, 0, kh, kw] flattened as scal[4*c + 2*kh + kw]
        w00 = scal_ref[4 * c + 0]
        w01 = scal_ref[4 * c + 1]
        w10 = scal_ref[4 * c + 2]
        w11 = scal_ref[4 * c + 3]
        cb = scal_ref[CB_OFF + c]
        g = scal_ref[G_OFF + c]
        bt = scal_ref[BT_OFF + c]

        # valid conv with kernel (2, E): one (B, 98) slab per channel
        conv = e0a * w00 + e1a * w01 + e0b * w10 + e1b * w11 + cb

        # BatchNorm2d batch statistics (track_running_stats=False),
        # single cross-lane reduction per statistic; clamped one-pass variance.
        s = jnp.sum(conv)
        sq = jnp.sum(conv * conv)
        mean = s / n
        var = jnp.maximum(sq / n - mean * mean, 0.0)
        scale = g * jax.lax.rsqrt(var + eps)
        shift = bt - mean * scale

        # scale once, max-pool adjacent pairs, then shift + ReLU after the max
        # (exact: max commutes with +const, ReLU is monotone).  Only even
        # lanes (h = 2p) feed nonzero FC weight rows.
        conv_s = conv * scale                                        # (B, 98)
        act = jnp.maximum(
            jnp.maximum(conv_s[:, : H - 1], conv_s[:, 1:]) + shift, 0.0
        )                                                            # (B, 97)
        slab_ref[:, c * N_PAD : c * N_PAD + (H - 1)] = act

    # --- fused FC: one bf16 MXU matmul over all three channels -------------
    acc = jnp.dot(slab_ref[...].astype(jnp.bfloat16), wbig_ref[...],
                  preferred_element_type=jnp.float32)                # (B, 128)
    out_ref[...] = acc + fcb_ref[...]


def pack_params(W_emb, conv_w, conv_b, bn_gamma, bn_beta, fc_w, fc_b):
    """One-time host-side parameter packing (hoisted out of the forward path)."""
    scal = jnp.concatenate([
        conv_w.reshape(-1).astype(jnp.float32),     # 12
        conv_b.reshape(-1).astype(jnp.float32),     # 3
        bn_gamma.reshape(-1).astype(jnp.float32),   # 3
        bn_beta.reshape(-1).astype(jnp.float32),    # 3
        W_emb.reshape(-1).astype(jnp.float32),      # 32: W_emb[v, d] -> 2*v + d
    ])                                              # (53,)
    assert scal.shape == (SCAL_LEN,)

    # Expanded FC weight (3*128, 128) in bf16:
    #   row c*128 + 2p  <- fc_w[:, c*49 + p]   (channel-major flatten, matches
    #                                            PyTorch .view(B, -1))
    #   odd rows and rows 97..127 are zero: they meet odd-offset pair-max
    #   values / scratch padding, which must not contribute.
    fcw_t = fc_w.T.astype(jnp.float32).reshape(NUM_FILTERS, HP, NUM_CLASSES)
    w_big = jnp.zeros((NUM_FILTERS, N_PAD, N_PAD), jnp.float32)
    w_big = w_big.at[:, 0:2 * HP:2, :NUM_CLASSES].set(fcw_t)
    w_big = w_big.reshape(NUM_FILTERS * N_PAD, N_PAD).astype(jnp.bfloat16)

    fcb_pad = jnp.zeros((1, N_PAD), jnp.float32)
    fcb_pad = fcb_pad.at[0, :NUM_CLASSES].set(fc_b.astype(jnp.float32))
    return scal, w_big, fcb_pad


def textcnn_forward(X, packed_params):
    scal, w_big, fcb_pad = packed_params
    B = X.shape[0]

    vmem = pl.BlockSpec(memory_space=pltpu.MemorySpace.VMEM)
    smem = pl.BlockSpec(memory_space=pltpu.MemorySpace.SMEM)

    out_padded = pl.pallas_call(
        textcnn_kernel,
        out_shape=jax.ShapeDtypeStruct((B, N_PAD), jnp.float32),
        in_specs=[vmem, vmem, vmem, smem],
        out_specs=vmem,
        scratch_shapes=[pltpu.VMEM((B, NUM_FILTERS * N_PAD), jnp.float32)],
    )(X, w_big, fcb_pad, scal)

    return out_padded[:, :NUM_CLASSES]


def textcnn_reference(X, W_emb, conv_w, conv_b, bn_gamma, bn_beta, fc_w, fc_b):
    """Pure-JAX mirror of the PyTorch forward (NCHW semantics)."""
    emb = jnp.take(W_emb, X, axis=0)                              # (B, L, E)
    B, L, E = emb.shape
    H = L - 1
    conv = jnp.stack([
        emb[:, :H, 0] * conv_w[c, 0, 0, 0] + emb[:, :H, 1] * conv_w[c, 0, 0, 1]
        + emb[:, 1:, 0] * conv_w[c, 0, 1, 0] + emb[:, 1:, 1] * conv_w[c, 0, 1, 1]
        + conv_b[c]
        for c in range(NUM_FILTERS)], axis=1)                     # (B, 3, H)
    mean = conv.mean(axis=(0, 2), keepdims=True)
    var = ((conv - mean) ** 2).mean(axis=(0, 2), keepdims=True)
    bn = (conv - mean) / jnp.sqrt(var + BN_EPS) * bn_gamma[None, :, None] \
         + bn_beta[None, :, None]
    act = jnp.maximum(bn, 0.0)
    pooled = act.reshape(B, NUM_FILTERS, H // 2, 2).max(axis=-1)  # (B, 3, 49)
    flat = pooled.reshape(B, -1)                                  # (B, 147)
    return flat @ fc_w.T + fc_b


if __name__ == "__main__":
    key = jax.random.PRNGKey(0)
    k_x, k_emb, k_cw, k_cb, k_fw, k_fb = jax.random.split(key, 6)

    B = 2
    X = jax.random.randint(k_x, (B, SEQ_LEN), 0, VOCAB_SIZE)

    # Deterministic, synthetic parameters (shapes per the PyTorch module).
    W_emb = jax.random.normal(k_emb, (VOCAB_SIZE, EMBEDDING_SIZE), jnp.float32)
    conv_w = 0.5 * jax.random.normal(k_cw, (NUM_FILTERS, 1, 2, EMBEDDING_SIZE), jnp.float32)
    conv_b = 0.1 * jax.random.normal(k_cb, (NUM_FILTERS,), jnp.float32)
    bn_gamma = jnp.ones((NUM_FILTERS,), jnp.float32)   # PyTorch BN default affine init
    bn_beta = jnp.zeros((NUM_FILTERS,), jnp.float32)
    fc_w = 0.1 * jax.random.normal(k_fw, (NUM_CLASSES, NUM_FILTERS * HP), jnp.float32)
    fc_b = 0.1 * jax.random.normal(k_fb, (NUM_CLASSES,), jnp.float32)

    # Parameter packing is done ONCE, outside the per-call forward path.
    packed = pack_params(W_emb, conv_w, conv_b, bn_gamma, bn_beta, fc_w, fc_b)
    packed = jax.block_until_ready(packed)

    out = textcnn_forward(X, packed)
    out = jax.block_until_ready(out)

    ref = textcnn_reference(X, W_emb, conv_w, conv_b, bn_gamma, bn_beta, fc_w, fc_b)
    ref = jax.block_until_ready(ref)

    assert out.shape == (B, NUM_CLASSES)
    assert jnp.allclose(out, ref, rtol=2e-2, atol=2e-2), (out, ref)
    print("KERNEL_OK")
</pallas_src>

<mosaic_0001>
module attributes {stable_mosaic.version = 11 : i64} {
  func.func @textcnn_kernel(%arg0: memref<2x99xi32, #tpu.memory_space<vmem>>, %arg1: memref<384x128xbf16, #tpu.memory_space<vmem>>, %arg2: memref<1x128xf32, #tpu.memory_space<vmem>>, %arg3: memref<53xf32, #tpu.memory_space<smem>>, %arg4: memref<2x128xf32, #tpu.memory_space<vmem>>, %arg5: memref<2x384xf32, #tpu.memory_space<vmem>>) attributes {dimension_semantics = [], scalar_prefetch = 0 : i64, scratch_operands = 1 : i64, tpu.core_type = #tpu.core_type<tc>} {
    %c0 = arith.constant 0 : index
    %c0_0 = arith.constant 0 : index
    %0 = vector.load %arg0[%c0, %c0_0] : memref<2x99xi32, #tpu.memory_space<vmem>>, vector<2x99xi32>
    %cst = arith.constant 0.000000e+00 : f32
    %1 = vector.broadcast %cst : f32 to vector<2x99xf32>
    %cst_1 = arith.constant 0.000000e+00 : f32
    %2 = vector.broadcast %cst_1 : f32 to vector<2x99xf32>
    %c0_i32 = arith.constant 0 : i32
    %3 = vector.broadcast %c0_i32 : i32 to vector<2x99xi32>
    %4 = arith.cmpi eq, %0, %3 : vector<2x99xi32>
    %c21 = arith.constant 21 : index
    %5 = memref.load %arg3[%c21] : memref<53xf32, #tpu.memory_space<smem>>
    %6 = vector.broadcast %5 : f32 to vector<2x99xf32>
    %7 = arith.select %4, %6, %1 : vector<2x99xi1>, vector<2x99xf32>
    %c22 = arith.constant 22 : index
    %8 = memref.load %arg3[%c22] : memref<53xf32, #tpu.memory_space<smem>>
    %9 = vector.broadcast %8 : f32 to vector<2x99xf32>
    %10 = arith.select %4, %9, %2 : vector<2x99xi1>, vector<2x99xf32>
    %c1_i32 = arith.constant 1 : i32
    %11 = vector.broadcast %c1_i32 : i32 to vector<2x99xi32>
    %12 = arith.cmpi eq, %0, %11 : vector<2x99xi32>
    %c23 = arith.constant 23 : index
    %13 = memref.load %arg3[%c23] : memref<53xf32, #tpu.memory_space<smem>>
    %14 = vector.broadcast %13 : f32 to vector<2x99xf32>
    %15 = arith.select %12, %14, %7 : vector<2x99xi1>, vector<2x99xf32>
    %c24 = arith.constant 24 : index
    %16 = memref.load %arg3[%c24] : memref<53xf32, #tpu.memory_space<smem>>
    %17 = vector.broadcast %16 : f32 to vector<2x99xf32>
    %18 = arith.select %12, %17, %10 : vector<2x99xi1>, vector<2x99xf32>
    %c2_i32 = arith.constant 2 : i32
    %19 = vector.broadcast %c2_i32 : i32 to vector<2x99xi32>
    %20 = arith.cmpi eq, %0, %19 : vector<2x99xi32>
    %c25 = arith.constant 25 : index
    %21 = memref.load %arg3[%c25] : memref<53xf32, #tpu.memory_space<smem>>
    %22 = vector.broadcast %21 : f32 to vector<2x99xf32>
    %23 = arith.select %20, %22, %15 : vector<2x99xi1>, vector<2x99xf32>
    %c26 = arith.constant 26 : index
    %24 = memref.load %arg3[%c26] : memref<53xf32, #tpu.memory_space<smem>>
    %25 = vector.broadcast %24 : f32 to vector<2x99xf32>
    %26 = arith.select %20, %25, %18 : vector<2x99xi1>, vector<2x99xf32>
    %c3_i32 = arith.constant 3 : i32
    %27 = vector.broadcast %c3_i32 : i32 to vector<2x99xi32>
    %28 = arith.cmpi eq, %0, %27 : vector<2x99xi32>
    %c27 = arith.constant 27 : index
    %29 = memref.load %arg3[%c27] : memref<53xf32, #tpu.memory_space<smem>>
    %30 = vector.broadcast %29 : f32 to vector<2x99xf32>
    %31 = arith.select %28, %30, %23 : vector<2x99xi1>, vector<2x99xf32>
    %c28 = arith.constant 28 : index
    %32 = memref.load %arg3[%c28] : memref<53xf32, #tpu.memory_space<smem>>
    %33 = vector.broadcast %32 : f32 to vector<2x99xf32>
    %34 = arith.select %28, %33, %26 : vector<2x99xi1>, vector<2x99xf32>
    %c4_i32 = arith.constant 4 : i32
    %35 = vector.broadcast %c4_i32 : i32 to vector<2x99xi32>
    %36 = arith.cmpi eq, %0, %35 : vector<2x99xi32>
    %c29 = arith.constant 29 : index
    %37 = memref.load %arg3[%c29] : memref<53xf32, #tpu.memory_space<smem>>
    %38 = vector.broadcast %37 : f32 to vector<2x99xf32>
    %39 = arith.select %36, %38, %31 : vector<2x99xi1>, vector<2x99xf32>
    %c30 = arith.constant 30 : index
    %40 = memref.load %arg3[%c30] : memref<53xf32, #tpu.memory_space<smem>>
    %41 = vector.broadcast %40 : f32 to vector<2x99xf32>
    %42 = arith.select %36, %41, %34 : vector<2x99xi1>, vector<2x99xf32>
    %c5_i32 = arith.constant 5 : i32
    %43 = vector.broadcast %c5_i32 : i32 to vector<2x99xi32>
    %44 = arith.cmpi eq, %0, %43 : vector<2x99xi32>
    %c31 = arith.constant 31 : index
    %45 = memref.load %arg3[%c31] : memref<53xf32, #tpu.memory_space<smem>>
    %46 = vector.broadcast %45 : f32 to vector<2x99xf32>
    %47 = arith.select %44, %46, %39 : vector<2x99xi1>, vector<2x99xf32>
    %c32 = arith.constant 32 : index
    %48 = memref.load %arg3[%c32] : memref<53xf32, #tpu.memory_space<smem>>
    %49 = vector.broadcast %48 : f32 to vector<2x99xf32>
    %50 = arith.select %44, %49, %42 : vector<2x99xi1>, vector<2x99xf32>
    %c6_i32 = arith.constant 6 : i32
    %51 = vector.broadcast %c6_i32 : i32 to vector<2x99xi32>
    %52 = arith.cmpi eq, %0, %51 : vector<2x99xi32>
    %c33 = arith.constant 33 : index
    %53 = memref.load %arg3[%c33] : memref<53xf32, #tpu.memory_space<smem>>
    %54 = vector.broadcast %53 : f32 to vector<2x99xf32>
    %55 = arith.select %52, %54, %47 : vector<2x99xi1>, vector<2x99xf32>
    %c34 = arith.constant 34 : index
    %56 = memref.load %arg3[%c34] : memref<53xf32, #tpu.memory_space<smem>>
    %57 = vector.broadcast %56 : f32 to vector<2x99xf32>
    %58 = arith.select %52, %57, %50 : vector<2x99xi1>, vector<2x99xf32>
    %c7_i32 = arith.constant 7 : i32
    %59 = vector.broadcast %c7_i32 : i32 to vector<2x99xi32>
    %60 = arith.cmpi eq, %0, %59 : vector<2x99xi32>
    %c35 = arith.constant 35 : index
    %61 = memref.load %arg3[%c35] : memref<53xf32, #tpu.memory_space<smem>>
    %62 = vector.broadcast %61 : f32 to vector<2x99xf32>
    %63 = arith.select %60, %62, %55 : vector<2x99xi1>, vector<2x99xf32>
    %c36 = arith.constant 36 : index
    %64 = memref.load %arg3[%c36] : memref<53xf32, #tpu.memory_space<smem>>
    %65 = vector.broadcast %64 : f32 to vector<2x99xf32>
    %66 = arith.select %60, %65, %58 : vector<2x99xi1>, vector<2x99xf32>
    %c8_i32 = arith.constant 8 : i32
    %67 = vector.broadcast %c8_i32 : i32 to vector<2x99xi32>
    %68 = arith.cmpi eq, %0, %67 : vector<2x99xi32>
    %c37 = arith.constant 37 : index
    %69 = memref.load %arg3[%c37] : memref<53xf32, #tpu.memory_space<smem>>
    %70 = vector.broadcast %69 : f32 to vector<2x99xf32>
    %71 = arith.select %68, %70, %63 : vector<2x99xi1>, vector<2x99xf32>
    %c38 = arith.constant 38 : index
    %72 = memref.load %arg3[%c38] : memref<53xf32, #tpu.memory_space<smem>>
    %73 = vector.broadcast %72 : f32 to vector<2x99xf32>
    %74 = arith.select %68, %73, %66 : vector<2x99xi1>, vector<2x99xf32>
    %c9_i32 = arith.constant 9 : i32
    %75 = vector.broadcast %c9_i32 : i32 to vector<2x99xi32>
    %76 = arith.cmpi eq, %0, %75 : vector<2x99xi32>
    %c39 = arith.constant 39 : index
    %77 = memref.load %arg3[%c39] : memref<53xf32, #tpu.memory_space<smem>>
    %78 = vector.broadcast %77 : f32 to vector<2x99xf32>
    %79 = arith.select %76, %78, %71 : vector<2x99xi1>, vector<2x99xf32>
    %c40 = arith.constant 40 : index
    %80 = memref.load %arg3[%c40] : memref<53xf32, #tpu.memory_space<smem>>
    %81 = vector.broadcast %80 : f32 to vector<2x99xf32>
    %82 = arith.select %76, %81, %74 : vector<2x99xi1>, vector<2x99xf32>
    %c10_i32 = arith.constant 10 : i32
    %83 = vector.broadcast %c10_i32 : i32 to vector<2x99xi32>
    %84 = arith.cmpi eq, %0, %83 : vector<2x99xi32>
    %c41 = arith.constant 41 : index
    %85 = memref.load %arg3[%c41] : memref<53xf32, #tpu.memory_space<smem>>
    %86 = vector.broadcast %85 : f32 to vector<2x99xf32>
    %87 = arith.select %84, %86, %79 : vector<2x99xi1>, vector<2x99xf32>
    %c42 = arith.constant 42 : index
    %88 = memref.load %arg3[%c42] : memref<53xf32, #tpu.memory_space<smem>>
    %89 = vector.broadcast %88 : f32 to vector<2x99xf32>
    %90 = arith.select %84, %89, %82 : vector<2x99xi1>, vector<2x99xf32>
    %c11_i32 = arith.constant 11 : i32
    %91 = vector.broadcast %c11_i32 : i32 to vector<2x99xi32>
    %92 = arith.cmpi eq, %0, %91 : vector<2x99xi32>
    %c43 = arith.constant 43 : index
    %93 = memref.load %arg3[%c43] : memref<53xf32, #tpu.memory_space<smem>>
    %94 = vector.broadcast %93 : f32 to vector<2x99xf32>
    %95 = arith.select %92, %94, %87 : vector<2x99xi1>, vector<2x99xf32>
    %c44 = arith.constant 44 : index
    %96 = memref.load %arg3[%c44] : memref<53xf32, #tpu.memory_space<smem>>
    %97 = vector.broadcast %96 : f32 to vector<2x99xf32>
    %98 = arith.select %92, %97, %90 : vector<2x99xi1>, vector<2x99xf32>
    %c12_i32 = arith.constant 12 : i32
    %99 = vector.broadcast %c12_i32 : i32 to vector<2x99xi32>
    %100 = arith.cmpi eq, %0, %99 : vector<2x99xi32>
    %c45 = arith.constant 45 : index
    %101 = memref.load %arg3[%c45] : memref<53xf32, #tpu.memory_space<smem>>
    %102 = vector.broadcast %101 : f32 to vector<2x99xf32>
    %103 = arith.select %100, %102, %95 : vector<2x99xi1>, vector<2x99xf32>
    %c46 = arith.constant 46 : index
    %104 = memref.load %arg3[%c46] : memref<53xf32, #tpu.memory_space<smem>>
    %105 = vector.broadcast %104 : f32 to vector<2x99xf32>
    %106 = arith.select %100, %105, %98 : vector<2x99xi1>, vector<2x99xf32>
    %c13_i32 = arith.constant 13 : i32
    %107 = vector.broadcast %c13_i32 : i32 to vector<2x99xi32>
    %108 = arith.cmpi eq, %0, %107 : vector<2x99xi32>
    %c47 = arith.constant 47 : index
    %109 = memref.load %arg3[%c47] : memref<53xf32, #tpu.memory_space<smem>>
    %110 = vector.broadcast %109 : f32 to vector<2x99xf32>
    %111 = arith.select %108, %110, %103 : vector<2x99xi1>, vector<2x99xf32>
    %c48 = arith.constant 48 : index
    %112 = memref.load %arg3[%c48] : memref<53xf32, #tpu.memory_space<smem>>
    %113 = vector.broadcast %112 : f32 to vector<2x99xf32>
    %114 = arith.select %108, %113, %106 : vector<2x99xi1>, vector<2x99xf32>
    %c14_i32 = arith.constant 14 : i32
    %115 = vector.broadcast %c14_i32 : i32 to vector<2x99xi32>
    %116 = arith.cmpi eq, %0, %115 : vector<2x99xi32>
    %c49 = arith.constant 49 : index
    %117 = memref.load %arg3[%c49] : memref<53xf32, #tpu.memory_space<smem>>
    %118 = vector.broadcast %117 : f32 to vector<2x99xf32>
    %119 = arith.select %116, %118, %111 : vector<2x99xi1>, vector<2x99xf32>
    %c50 = arith.constant 50 : index
    %120 = memref.load %arg3[%c50] : memref<53xf32, #tpu.memory_space<smem>>
    %121 = vector.broadcast %120 : f32 to vector<2x99xf32>
    %122 = arith.select %116, %121, %114 : vector<2x99xi1>, vector<2x99xf32>
    %c15_i32 = arith.constant 15 : i32
    %123 = vector.broadcast %c15_i32 : i32 to vector<2x99xi32>
    %124 = arith.cmpi eq, %0, %123 : vector<2x99xi32>
    %c51 = arith.constant 51 : index
    %125 = memref.load %arg3[%c51] : memref<53xf32, #tpu.memory_space<smem>>
    %126 = vector.broadcast %125 : f32 to vector<2x99xf32>
    %127 = arith.select %124, %126, %119 : vector<2x99xi1>, vector<2x99xf32>
    %c52 = arith.constant 52 : index
    %128 = memref.load %arg3[%c52] : memref<53xf32, #tpu.memory_space<smem>>
    %129 = vector.broadcast %128 : f32 to vector<2x99xf32>
    %130 = arith.select %124, %129, %122 : vector<2x99xi1>, vector<2x99xf32>
    %131 = vector.extract_strided_slice %127 {offsets = [0, 0], sizes = [2, 98], strides = [1, 1]} : vector<2x99xf32> to vector<2x98xf32>
    %132 = vector.extract_strided_slice %130 {offsets = [0, 0], sizes = [2, 98], strides = [1, 1]} : vector<2x99xf32> to vector<2x98xf32>
    %133 = vector.extract_strided_slice %127 {offsets = [0, 1], sizes = [2, 98], strides = [1, 1]} : vector<2x99xf32> to vector<2x98xf32>
    %134 = vector.extract_strided_slice %130 {offsets = [0, 1], sizes = [2, 98], strides = [1, 1]} : vector<2x99xf32> to vector<2x98xf32>
    %cst_2 = arith.constant 0.000000e+00 : f32
    %135 = vector.broadcast %cst_2 : f32 to vector<2x384xf32>
    %c0_3 = arith.constant 0 : index
    %c0_4 = arith.constant 0 : index
    %136 = vector.load %arg5[%c0_3, %c0_4] : memref<2x384xf32, #tpu.memory_space<vmem>>, vector<2x384xf32>
    tpu.vector_store %arg5[%c0_3, %c0_4], %135 {strides = array<i32>} : memref<2x384xf32, #tpu.memory_space<vmem>>, vector<2x384xf32>,
    %c0_5 = arith.constant 0 : index
    %137 = memref.load %arg3[%c0_5] : memref<53xf32, #tpu.memory_space<smem>>
    %c1 = arith.constant 1 : index
    %138 = memref.load %arg3[%c1] : memref<53xf32, #tpu.memory_space<smem>>
    %c2 = arith.constant 2 : index
    %139 = memref.load %arg3[%c2] : memref<53xf32, #tpu.memory_space<smem>>
    %c3 = arith.constant 3 : index
    %140 = memref.load %arg3[%c3] : memref<53xf32, #tpu.memory_space<smem>>
    %c12 = arith.constant 12 : index
    %141 = memref.load %arg3[%c12] : memref<53xf32, #tpu.memory_space<smem>>
    %c15 = arith.constant 15 : index
    %142 = memref.load %arg3[%c15] : memref<53xf32, #tpu.memory_space<smem>>
    %c18 = arith.constant 18 : index
    %143 = memref.load %arg3[%c18] : memref<53xf32, #tpu.memory_space<smem>>
    %144 = vector.broadcast %137 : f32 to vector<2x98xf32>
    %145 = arith.mulf %131, %144 : vector<2x98xf32>
    %146 = vector.broadcast %138 : f32 to vector<2x98xf32>
    %147 = arith.mulf %132, %146 : vector<2x98xf32>
    %148 = arith.addf %145, %147 : vector<2x98xf32>
    %149 = vector.broadcast %139 : f32 to vector<2x98xf32>
    %150 = arith.mulf %133, %149 : vector<2x98xf32>
    %151 = arith.addf %148, %150 : vector<2x98xf32>
    %152 = vector.broadcast %140 : f32 to vector<2x98xf32>
    %153 = arith.mulf %134, %152 : vector<2x98xf32>
    %154 = arith.addf %151, %153 : vector<2x98xf32>
    %155 = vector.broadcast %141 : f32 to vector<2x98xf32>
    %156 = arith.addf %154, %155 : vector<2x98xf32>
    %157 = vector.shape_cast %156 : vector<2x98xf32> to vector<1x2x98xf32>
    %cst_6 = arith.constant dense<0.000000e+00> : vector<1xf32>
    %158 = vector.multi_reduction <add>, %157, %cst_6 [1, 2] : vector<1x2x98xf32> to vector<1xf32>
    %159 = vector.shape_cast %158 : vector<1xf32> to vector<1x1x1xf32>
    %160 = vector.extract %159[0, 0, 0] : f32 from vector<1x1x1xf32>
    %161 = arith.mulf %156, %156 : vector<2x98xf32>
    %162 = vector.shape_cast %161 : vector<2x98xf32> to vector<1x2x98xf32>
    %cst_7 = arith.constant dense<0.000000e+00> : vector<1xf32>
    %163 = vector.multi_reduction <add>, %162, %cst_7 [1, 2] : vector<1x2x98xf32> to vector<1xf32>
    %164 = vector.shape_cast %163 : vector<1xf32> to vector<1x1x1xf32>
    %165 = vector.extract %164[0, 0, 0] : f32 from vector<1x1x1xf32>
    %cst_8 = arith.constant 1.960000e+02 : f32
    %166 = arith.divf %160, %cst_8 : f32
    %cst_9 = arith.constant 1.960000e+02 : f32
    %167 = arith.divf %165, %cst_9 : f32
    %168 = arith.mulf %166, %166 : f32
    %169 = arith.subf %167, %168 : f32
    %cst_10 = arith.constant 0.000000e+00 : f32
    %170 = arith.maximumf %169, %cst_10 : f32
    %cst_11 = arith.constant 9.99999974E-6 : f32
    %171 = arith.addf %170, %cst_11 : f32
    %172 = math.rsqrt %171 : f32
    %173 = arith.mulf %142, %172 : f32
    %174 = arith.mulf %166, %173 : f32
    %175 = arith.subf %143, %174 : f32
    %176 = vector.broadcast %173 : f32 to vector<2x98xf32>
    %177 = arith.mulf %156, %176 : vector<2x98xf32>
    %178 = vector.extract_strided_slice %177 {offsets = [0, 0], sizes = [2, 97], strides = [1, 1]} : vector<2x98xf32> to vector<2x97xf32>
    %179 = vector.extract_strided_slice %177 {offsets = [0, 1], sizes = [2, 97], strides = [1, 1]} : vector<2x98xf32> to vector<2x97xf32>
    %180 = arith.maximumf %178, %179 : vector<2x97xf32>
    %181 = vector.broadcast %175 : f32 to vector<2x97xf32>
    %182 = arith.addf %180, %181 : vector<2x97xf32>
    %cst_12 = arith.constant 0.000000e+00 : f32
    %183 = vector.broadcast %cst_12 : f32 to vector<2x97xf32>
    %184 = arith.maximumf %182, %183 : vector<2x97xf32>
    %c0_13 = arith.constant 0 : index
    %c0_14 = arith.constant 0 : index
    %185 = vector.load %arg5[%c0_13, %c0_14] : memref<2x384xf32, #tpu.memory_space<vmem>>, vector<2x97xf32>
    tpu.vector_store %arg5[%c0_13, %c0_14], %184 {strides = array<i32>} : memref<2x384xf32, #tpu.memory_space<vmem>>, vector<2x97xf32>,
    %c4 = arith.constant 4 : index
    %186 = memref.load %arg3[%c4] : memref<53xf32, #tpu.memory_space<smem>>
    %c5 = arith.constant 5 : index
    %187 = memref.load %arg3[%c5] : memref<53xf32, #tpu.memory_space<smem>>
    %c6 = arith.constant 6 : index
    %188 = memref.load %arg3[%c6] : memref<53xf32, #tpu.memory_space<smem>>
    %c7 = arith.constant 7 : index
    %189 = memref.load %arg3[%c7] : memref<53xf32, #tpu.memory_space<smem>>
    %c13 = arith.constant 13 : index
    %190 = memref.load %arg3[%c13] : memref<53xf32, #tpu.memory_space<smem>>
    %c16 = arith.constant 16 : index
    %191 = memref.load %arg3[%c16] : memref<53xf32, #tpu.memory_space<smem>>
    %c19 = arith.constant 19 : index
    %192 = memref.load %arg3[%c19] : memref<53xf32, #tpu.memory_space<smem>>
    %193 = vector.broadcast %186 : f32 to vector<2x98xf32>
    %194 = arith.mulf %131, %193 : vector<2x98xf32>
    %195 = vector.broadcast %187 : f32 to vector<2x98xf32>
    %196 = arith.mulf %132, %195 : vector<2x98xf32>
    %197 = arith.addf %194, %196 : vector<2x98xf32>
    %198 = vector.broadcast %188 : f32 to vector<2x98xf32>
    %199 = arith.mulf %133, %198 : vector<2x98xf32>
    %200 = arith.addf %197, %199 : vector<2x98xf32>
    %201 = vector.broadcast %189 : f32 to vector<2x98xf32>
    %202 = arith.mulf %134, %201 : vector<2x98xf32>
    %203 = arith.addf %200, %202 : vector<2x98xf32>
    %204 = vector.broadcast %190 : f32 to vector<2x98xf32>
    %205 = arith.addf %203, %204 : vector<2x98xf32>
    %206 = vector.shape_cast %205 : vector<2x98xf32> to vector<1x2x98xf32>
    %cst_15 = arith.constant dense<0.000000e+00> : vector<1xf32>
    %207 = vector.multi_reduction <add>, %206, %cst_15 [1, 2] : vector<1x2x98xf32> to vector<1xf32>
    %208 = vector.shape_cast %207 : vector<1xf32> to vector<1x1x1xf32>
    %209 = vector.extract %208[0, 0, 0] : f32 from vector<1x1x1xf32>
    %210 = arith.mulf %205, %205 : vector<2x98xf32>
    %211 = vector.shape_cast %210 : vector<2x98xf32> to vector<1x2x98xf32>
    %cst_16 = arith.constant dense<0.000000e+00> : vector<1xf32>
    %212 = vector.multi_reduction <add>, %211, %cst_16 [1, 2] : vector<1x2x98xf32> to vector<1xf32>
    %213 = vector.shape_cast %212 : vector<1xf32> to vector<1x1x1xf32>
    %214 = vector.extract %213[0, 0, 0] : f32 from vector<1x1x1xf32>
    %cst_17 = arith.constant 1.960000e+02 : f32
    %215 = arith.divf %209, %cst_17 : f32
    %cst_18 = arith.constant 1.960000e+02 : f32
    %216 = arith.divf %214, %cst_18 : f32
    %217 = arith.mulf %215, %215 : f32
    %218 = arith.subf %216, %217 : f32
    %cst_19 = arith.constant 0.000000e+00 : f32
    %219 = arith.maximumf %218, %cst_19 : f32
    %cst_20 = arith.constant 9.99999974E-6 : f32
    %220 = arith.addf %219, %cst_20 : f32
    %221 = math.rsqrt %220 : f32
    %222 = arith.mulf %191, %221 : f32
    %223 = arith.mulf %215, %222 : f32
    %224 = arith.subf %192, %223 : f32
    %225 = vector.broadcast %222 : f32 to vector<2x98xf32>
    %226 = arith.mulf %205, %225 : vector<2x98xf32>
    %227 = vector.extract_strided_slice %226 {offsets = [0, 0], sizes = [2, 97], strides = [1, 1]} : vector<2x98xf32> to vector<2x97xf32>
    %228 = vector.extract_strided_slice %226 {offsets = [0, 1], sizes = [2, 97], strides = [1, 1]} : vector<2x98xf32> to vector<2x97xf32>
    %229 = arith.maximumf %227, %228 : vector<2x97xf32>
    %230 = vector.broadcast %224 : f32 to vector<2x97xf32>
    %231 = arith.addf %229, %230 : vector<2x97xf32>
    %cst_21 = arith.constant 0.000000e+00 : f32
    %232 = vector.broadcast %cst_21 : f32 to vector<2x97xf32>
    %233 = arith.maximumf %231, %232 : vector<2x97xf32>
    %c0_22 = arith.constant 0 : index
    %c128 = arith.constant 128 : index
    %234 = vector.load %arg5[%c0_22, %c128] : memref<2x384xf32, #tpu.memory_space<vmem>>, vector<2x97xf32>
    tpu.vector_store %arg5[%c0_22, %c128], %233 {strides = array<i32>} : memref<2x384xf32, #tpu.memory_space<vmem>>, vector<2x97xf32>,
    %c8 = arith.constant 8 : index
    %235 = memref.load %arg3[%c8] : memref<53xf32, #tpu.memory_space<smem>>
    %c9 = arith.constant 9 : index
    %236 = memref.load %arg3[%c9] : memref<53xf32, #tpu.memory_space<smem>>
    %c10 = arith.constant 10 : index
    %237 = memref.load %arg3[%c10] : memref<53xf32, #tpu.memory_space<smem>>
    %c11 = arith.constant 11 : index
    %238 = memref.load %arg3[%c11] : memref<53xf32, #tpu.memory_space<smem>>
    %c14 = arith.constant 14 : index
    %239 = memref.load %arg3[%c14] : memref<53xf32, #tpu.memory_space<smem>>
    %c17 = arith.constant 17 : index
    %240 = memref.load %arg3[%c17] : memref<53xf32, #tpu.memory_space<smem>>
    %c20 = arith.constant 20 : index
    %241 = memref.load %arg3[%c20] : memref<53xf32, #tpu.memory_space<smem>>
    %242 = vector.broadcast %235 : f32 to vector<2x98xf32>
    %243 = arith.mulf %131, %242 : vector<2x98xf32>
    %244 = vector.broadcast %236 : f32 to vector<2x98xf32>
    %245 = arith.mulf %132, %244 : vector<2x98xf32>
    %246 = arith.addf %243, %245 : vector<2x98xf32>
    %247 = vector.broadcast %237 : f32 to vector<2x98xf32>
    %248 = arith.mulf %133, %247 : vector<2x98xf32>
    %249 = arith.addf %246, %248 : vector<2x98xf32>
    %250 = vector.broadcast %238 : f32 to vector<2x98xf32>
    %251 = arith.mulf %134, %250 : vector<2x98xf32>
    %252 = arith.addf %249, %251 : vector<2x98xf32>
    %253 = vector.broadcast %239 : f32 to vector<2x98xf32>
    %254 = arith.addf %252, %253 : vector<2x98xf32>
    %255 = vector.shape_cast %254 : vector<2x98xf32> to vector<1x2x98xf32>
    %cst_23 = arith.constant dense<0.000000e+00> : vector<1xf32>
    %256 = vector.multi_reduction <add>, %255, %cst_23 [1, 2] : vector<1x2x98xf32> to vector<1xf32>
    %257 = vector.shape_cast %256 : vector<1xf32> to vector<1x1x1xf32>
    %258 = vector.extract %257[0, 0, 0] : f32 from vector<1x1x1xf32>
    %259 = arith.mulf %254, %254 : vector<2x98xf32>
    %260 = vector.shape_cast %259 : vector<2x98xf32> to vector<1x2x98xf32>
    %cst_24 = arith.constant dense<0.000000e+00> : vector<1xf32>
    %261 = vector.multi_reduction <add>, %260, %cst_24 [1, 2] : vector<1x2x98xf32> to vector<1xf32>
    %262 = vector.shape_cast %261 : vector<1xf32> to vector<1x1x1xf32>
    %263 = vector.extract %262[0, 0, 0] : f32 from vector<1x1x1xf32>
    %cst_25 = arith.constant 1.960000e+02 : f32
    %264 = arith.divf %258, %cst_25 : f32
    %cst_26 = arith.constant 1.960000e+02 : f32
    %265 = arith.divf %263, %cst_26 : f32
    %266 = arith.mulf %264, %264 : f32
    %267 = arith.subf %265, %266 : f32
    %cst_27 = arith.constant 0.000000e+00 : f32
    %268 = arith.maximumf %267, %cst_27 : f32
    %cst_28 = arith.constant 9.99999974E-6 : f32
    %269 = arith.addf %268, %cst_28 : f32
    %270 = math.rsqrt %269 : f32
    %271 = arith.mulf %240, %270 : f32
    %272 = arith.mulf %264, %271 : f32
    %273 = arith.subf %241, %272 : f32
    %274 = vector.broadcast %271 : f32 to vector<2x98xf32>
    %275 = arith.mulf %254, %274 : vector<2x98xf32>
    %276 = vector.extract_strided_slice %275 {offsets = [0, 0], sizes = [2, 97], strides = [1, 1]} : vector<2x98xf32> to vector<2x97xf32>
    %277 = vector.extract_strided_slice %275 {offsets = [0, 1], sizes = [2, 97], strides = [1, 1]} : vector<2x98xf32> to vector<2x97xf32>
    %278 = arith.maximumf %276, %277 : vector<2x97xf32>
    %279 = vector.broadcast %273 : f32 to vector<2x97xf32>
    %280 = arith.addf %278, %279 : vector<2x97xf32>
    %cst_29 = arith.constant 0.000000e+00 : f32
    %281 = vector.broadcast %cst_29 : f32 to vector<2x97xf32>
    %282 = arith.maximumf %280, %281 : vector<2x97xf32>
    %c0_30 = arith.constant 0 : index
    %c256 = arith.constant 256 : index
    %283 = vector.load %arg5[%c0_30, %c256] : memref<2x384xf32, #tpu.memory_space<vmem>>, vector<2x97xf32>
    tpu.vector_store %arg5[%c0_30, %c256], %282 {strides = array<i32>} : memref<2x384xf32, #tpu.memory_space<vmem>>, vector<2x97xf32>,
    %c0_31 = arith.constant 0 : index
    %c0_32 = arith.constant 0 : index
    %284 = vector.load %arg5[%c0_31, %c0_32] : memref<2x384xf32, #tpu.memory_space<vmem>>, vector<2x384xf32>
    %285 = arith.truncf %284 : vector<2x384xf32> to vector<2x384xbf16>
    %c0_33 = arith.constant 0 : index
    %c0_34 = arith.constant 0 : index
    %286 = vector.load %arg1[%c0_33, %c0_34] : memref<384x128xbf16, #tpu.memory_space<vmem>>, vector<384x128xbf16>
    %cst_35 = arith.constant dense<0.000000e+00> : vector<2x128xf32>
    %287 = tpu.matmul %285, %286, %cst_35 {dimension_numbers = #tpu.dot_dimension_numbers<[1], [0], [0], [1], [0, 0, 1, 1], [], []>} : vector<2x384xbf16>, vector<384x128xbf16>, vector<2x128xf32> -> vector<2x128xf32>
    %c0_36 = arith.constant 0 : index
    %c0_37 = arith.constant 0 : index
    %288 = vector.load %arg2[%c0_36, %c0_37] : memref<1x128xf32, #tpu.memory_space<vmem>>, vector<1x128xf32>
    %289 = vector.broadcast %288 : vector<1x128xf32> to vector<2x128xf32>
    %290 = arith.addf %287, %289 : vector<2x128xf32>
    %c0_38 = arith.constant 0 : index
    %c0_39 = arith.constant 0 : index
    %291 = vector.load %arg4[%c0_38, %c0_39] : memref<2x128xf32, #tpu.memory_space<vmem>>, vector<2x128xf32>
    tpu.vector_store %arg4[%c0_38, %c0_39], %290 {strides = array<i32>} : memref<2x128xf32, #tpu.memory_space<vmem>>, vector<2x128xf32>,
    return
  }
}

</mosaic_0001>

<llo_original>
// kernel: tpu_custom_call.1
$region0: #{tpu_custom_call.1}
  #allocation0 [shape = 'u32[]', space=smem, size = 0x4, offset = 0x4, fixed_abs, tag = 'smem constant byte address 0x4 - core index']
  #allocation1 [shape = 'u32[144,128]{1,0:T(1,128)}', space=vmem, size = 0x12000, scoped, tag = 'internal scratch']
  #allocation2 [shape = 'f32[2,384]{1,0:T(2,128)}', space=vmem, size = 0xc00, scoped, tag = 'scratch operand']
  %s0 = inlined_call_operand.hbm [shape: s32[2,99], index: 0, kind: input, shape index: {}]
  %s1 = inlined_call_operand.hbm [shape: bf16[384,128], index: 1, kind: input, shape index: {}]
  %s2 = inlined_call_operand.vmem [shape: f32[1,128], index: 2, kind: input, shape index: {}]
  %s3 = inlined_call_operand.vmem [shape: f32[53], index: 3, kind: input, shape index: {}]
  %s4 = inlined_call_operand.hbm [shape: f32[2,128], index: 4, kind: output, shape index: {}]
  %s5 = sld [smem:[#allocation0]]
  $region38: #{tpu_custom_call.1} parent=0
    _
  %s7 = ssub.s32 1, %s5
  %s8 = scalar_select 0, %s7, %s5
  $region1: #{tpu_custom_call.1} parent=0
    #allocation3 [shape = 'u8[1024]{0}', space=vmem, size = 0x400, scoped, tag = 'input window, operand 0, single buffered']
    #allocation4 [shape = 's32[1]{0}', space=sflag, size = 0x4, scoped, tag = 'scoped memory for tpu_custom_call.1']
    #allocation5 [shape = 's32[1]{0}', space=sflag, size = 0x4, scoped, tag = 'scoped memory for tpu_custom_call.1']
    #allocation6 [shape = 's32[1]{0}', space=sflag, size = 0x4, scoped, tag = 'scoped memory for tpu_custom_call.1']
    #allocation7 [shape = 'u8[98304]{0}', space=vmem, size = 0x18000, scoped, tag = 'input window, operand 1, single buffered']
    #allocation8 [shape = 's32[1]{0}', space=sflag, size = 0x4, scoped, tag = 'scoped memory for tpu_custom_call.1']
    #allocation9 [shape = 'u8[512]{0}', space=smem, size = 0x200, scoped, tag = 'input window, operand 3, single buffered']
    #allocation10 [shape = 'u8[1024]{0}', space=vmem, size = 0x400, scoped, tag = 'output window, operand 0, single buffered']
    %9 = vsyncpa [#allocation4], 0
    %10 = vsyncpa [#allocation8], 0
    %11 = vsyncpa [#allocation6], 0
    %12 = vsyncpa [#allocation5], 0
    // Predicated region
    $region2: #{tpu_custom_call.1} parent=1 // pred_check
      _
    $region3: #{tpu_custom_call.1} parent=1 // pred_check_branch
      %14 = sbr.rel (0) target = $region5
    $region4: #{tpu_custom_call.1} parent=1 // pred_region
      %s16 = ssub.s32 32, 32
      %17 = vsyncadd [#allocation4], %s16
      %s19 = sshll.u32 [#allocation3], 4
      %s20 = int_to_ptr.vmem [resolvable:$true] %s19
      %22 = dma.hbm_to_vmem [thread:$0]  %s0, 32, %s20, [#allocation4]
    $region5: #{tpu_custom_call.1} parent=1 // pred_fallthru
      _
    // Predicated region
    $region6: #{tpu_custom_call.1} parent=1 // pred_check
      _
    $region7: #{tpu_custom_call.1} parent=1 // pred_check_branch
      %24 = sbr.rel (0) target = $region9
    $region8: #{tpu_custom_call.1} parent=1 // pred_region
      %s26 = ssub.s32 3072, 3072
      %27 = vsyncadd [#allocation8], %s26
      %s28 = sshll.u32 [#allocation7], 4
      %s29 = int_to_ptr.vmem [resolvable:$true] %s28
      %34 = dma.hbm_to_vmem [thread:$0]  %s1, 3072, %s29, [#allocation8], 64, 64, 4
    $region9: #{tpu_custom_call.1} parent=1 // pred_fallthru
      _
    // Predicated region
    $region10: #{tpu_custom_call.1} parent=1 // pred_check
      _
    $region11: #{tpu_custom_call.1} parent=1 // pred_check_branch
      %36 = sbr.rel (0) target = $region13
    $region12: #{tpu_custom_call.1} parent=1 // pred_region
      _
    $region13: #{tpu_custom_call.1} parent=1 // pred_fallthru
      _
    // Predicated region
    $region14: #{tpu_custom_call.1} parent=1 // pred_check
      _
    $region15: #{tpu_custom_call.1} parent=1 // pred_check_branch
      %38 = sbr.rel (0) target = $region17
    $region16: #{tpu_custom_call.1} parent=1 // pred_region
      %s40 = ssub.s32 16, 16
      %41 = vsyncadd [#allocation6], %s40
      %s43 = sshll.u32 %s3, 4
      %s44 = int_to_ptr.vmem [resolvable:$true] %s43
      %46 = dma.vmem_to_smem %s44, 16, [#allocation9], [#allocation6]
    $region17: #{tpu_custom_call.1} parent=1 // pred_fallthru
      _
    // Predicated region
    $region18: #{tpu_custom_call.1} parent=1 // pred_check
      _
    $region19: #{tpu_custom_call.1} parent=1 // pred_check_branch
      %48 = sbr.rel (0) target = $region21
    $region20: #{tpu_custom_call.1} parent=1 // pred_region
      %49 = dma.done [#allocation4], 32
    $region21: #{tpu_custom_call.1} parent=1 // pred_fallthru
      _
    // Predicated region
    $region22: #{tpu_custom_call.1} parent=1 // pred_check
      _
    $region23: #{tpu_custom_call.1} parent=1 // pred_check_branch
      %51 = sbr.rel (0) target = $region25
    $region24: #{tpu_custom_call.1} parent=1 // pred_region
      %52 = dma.done [#allocation8], 3072
    $region25: #{tpu_custom_call.1} parent=1 // pred_fallthru
      _
    // Predicated region
    $region26: #{tpu_custom_call.1} parent=1 // pred_check
      _
    $region27: #{tpu_custom_call.1} parent=1 // pred_check_branch
      %54 = sbr.rel (0) target = $region29
    $region28: #{tpu_custom_call.1} parent=1 // pred_region
      %55 = dma.done [#allocation6], 16
    $region29: #{tpu_custom_call.1} parent=1 // pred_fallthru
      _
    %56 = sfence
    %v58 = vld [vmem:[#allocation3] sm:$0x3]
    %vm59 = vcmp.eq.s32.totalorder %v58, 0
    %s60 = sld [smem:[#allocation9 + $0x15]]
    %v61 = vstv %s60
    %v62 = vsel %vm59, %v61, 0.0
    %s63 = sld [smem:[#allocation9 + $0x16]]
    %v64 = vstv %s63
    %v65 = vsel %vm59, %v64, 0.0
    %vm66 = vcmp.eq.s32.totalorder %v58, 1
    %s67 = sld [smem:[#allocation9 + $0x17]]
    %v68 = vstv %s67
    %v69 = vsel %vm66, %v68, %v62
    %s70 = sld [smem:[#allocation9 + $0x18]]
    %v71 = vstv %s70
    %v72 = vsel %vm66, %v71, %v65
    %vm73 = vcmp.eq.s32.totalorder %v58, 2
    %s74 = sld [smem:[#allocation9 + $0x19]]
    %v75 = vstv %s74
    %v76 = vsel %vm73, %v75, %v69
    %s77 = sld [smem:[#allocation9 + $0x1a]]
    %v78 = vstv %s77
    %v79 = vsel %vm73, %v78, %v72
    %vm80 = vcmp.eq.s32.totalorder %v58, 3
    %s81 = sld [smem:[#allocation9 + $0x1b]]
    %v82 = vstv %s81
    %v83 = vsel %vm80, %v82, %v76
    %s84 = sld [smem:[#allocation9 + $0x1c]]
    %v85 = vstv %s84
    %v86 = vsel %vm80, %v85, %v79
    %vm87 = vcmp.eq.s32.totalorder %v58, 4
    %s88 = sld [smem:[#allocation9 + $0x1d]]
    %v89 = vstv %s88
    %v90 = vsel %vm87, %v89, %v83
    %s91 = sld [smem:[#allocation9 + $0x1e]]
    %v92 = vstv %s91
    %v93 = vsel %vm87, %v92, %v86
    %vm94 = vcmp.eq.s32.totalorder %v58, 5
    %s95 = sld [smem:[#allocation9 + $0x1f]]
    %v96 = vstv %s95
    %v97 = vsel %vm94, %v96, %v90
    %s98 = sld [smem:[#allocation9 + $0x20]]
    %v99 = vstv %s98
    %v100 = vsel %vm94, %v99, %v93
    %vm101 = vcmp.eq.s32.totalorder %v58, 6
    %s102 = sld [smem:[#allocation9 + $0x21]]
    %v103 = vstv %s102
    %v104 = vsel %vm101, %v103, %v97
    %s105 = sld [smem:[#allocation9 + $0x22]]
    %v106 = vstv %s105
    %v107 = vsel %vm101, %v106, %v100
    %vm108 = vcmp.eq.s32.totalorder %v58, 7
    %s109 = sld [smem:[#allocation9 + $0x23]]
    %v110 = vstv %s109
    %v111 = vsel %vm108, %v110, %v104
    %s112 = sld [smem:[#allocation9 + $0x24]]
    %v113 = vstv %s112
    %v114 = vsel %vm108, %v113, %v107
    %vm115 = vcmp.eq.s32.totalorder %v58, 8
    %s116 = sld [smem:[#allocation9 + $0x25]]
    %v117 = vstv %s116
    %v118 = vsel %vm115, %v117, %v111
    %s119 = sld [smem:[#allocation9 + $0x26]]
    %v120 = vstv %s119
    %v121 = vsel %vm115, %v120, %v114
    %vm122 = vcmp.eq.s32.totalorder %v58, 9
    %s123 = sld [smem:[#allocation9 + $0x27]]
    %v124 = vstv %s123
    %v125 = vsel %vm122, %v124, %v118
    %s126 = sld [smem:[#allocation9 + $0x28]]
    %v127 = vstv %s126
    %v128 = vsel %vm122, %v127, %v121
    %vm129 = vcmp.eq.s32.totalorder %v58, 10
    %s130 = sld [smem:[#allocation9 + $0x29]]
    %v131 = vstv %s130
    %v132 = vsel %vm129, %v131, %v125
    %s133 = sld [smem:[#allocation9 + $0x2a]]
    %v134 = vstv %s133
    %v135 = vsel %vm129, %v134, %v128
    %vm136 = vcmp.eq.s32.totalorder %v58, 11
    %s137 = sld [smem:[#allocation9 + $0x2b]]
    %v138 = vstv %s137
    %v139 = vsel %vm136, %v138, %v132
    %s140 = sld [smem:[#allocation9 + $0x2c]]
    %v141 = vstv %s140
    %v142 = vsel %vm136, %v141, %v135
    %vm143 = vcmp.eq.s32.totalorder %v58, 12
    %s144 = sld [smem:[#allocation9 + $0x2d]]
    %v145 = vstv %s144
    %v146 = vsel %vm143, %v145, %v139
    %s147 = sld [smem:[#allocation9 + $0x2e]]
    %v148 = vstv %s147
    %v149 = vsel %vm143, %v148, %v142
    %vm150 = vcmp.eq.s32.totalorder %v58, 13
    %s151 = sld [smem:[#allocation9 + $0x2f]]
    %v152 = vstv %s151
    %v153 = vsel %vm150, %v152, %v146
    %s154 = sld [smem:[#allocation9 + $0x30]]
    %v155 = vstv %s154
    %v156 = vsel %vm150, %v155, %v149
    %vm157 = vcmp.eq.s32.totalorder %v58, 14
    %s158 = sld [smem:[#allocation9 + $0x31]]
    %v159 = vstv %s158
    %v160 = vsel %vm157, %v159, %v153
    %s161 = sld [smem:[#allocation9 + $0x32]]
    %v162 = vstv %s161
    %v163 = vsel %vm157, %v162, %v156
    %vm164 = vcmp.eq.s32.totalorder %v58, 15
    %s165 = sld [smem:[#allocation9 + $0x33]]
    %v166 = vstv %s165
    %v167 = vsel %vm164, %v166, %v160
    %s168 = sld [smem:[#allocation9 + $0x34]]
    %v169 = vstv %s168
    %v170 = vsel %vm164, %v169, %v163
    %171 = vst [vmem:[#allocation2] sm:$0x3f] 0.0
    %s172 = sld [smem:[#allocation9]]
    %s173 = sld [smem:[#allocation9 + $0x1]]
    %s174 = sld [smem:[#allocation9 + $0x2]]
    %s175 = sld [smem:[#allocation9 + $0x3]]
    %s176 = sld [smem:[#allocation9 + $0xc]]
    %s177 = sld [smem:[#allocation9 + $0xf]]
    %s178 = sld [smem:[#allocation9 + $0x12]]
    %v179 = vstv %s172
    %v180 = vmul.f32 %v167, %v179
    %v181 = vstv %s173
    %v182 = vmul.f32 %v170, %v181
    %v183 = vadd.f32 %v180, %v182
    %v184 = vstv %s174
    %v185 = vmul.f32 %v167, %v184
    %187 = vrot.lane.b32.xlu0 %v185, 127
    %v188 = vpop.permute.xlu0 %187
    %v190 = vadd.f32 %v183, %v188
    %v191 = vstv %s175
    %v192 = vmul.f32 %v170, %v191
    %194 = vrot.lane.b32.xlu0 %v192, 127
    %v195 = vpop.permute.xlu0 %194
    %v197 = vadd.f32 %v190, %v195
    %v198 = vstv %s176
    %v199 = vadd.f32 %v197, %v198
    %vm200 = vcmask 795648
    %v201 = vsel %vm200, %v199, 0.0
    %202 = vadd.xlane.f32.xlu0 %v201
    %v203 = vpop.xlane.xlu0 %202
    %v204 = vrot.slane %v203, 4
    %v205 = vadd.f32 %v203, %v204
    %v206 = vrot.slane %v205, 2
    %v207 = vadd.f32 %v205, %v206
    %v208 = vrot.slane %v207, 1
    %v209 = vadd.f32 %v207, %v208
    %s210 = vtos %v209
    %v211 = vmul.f32 %v199, %v199
    %v212 = vsel %vm200, %v211, 0.0
    %213 = vadd.xlane.f32.xlu0 %v212
    %v214 = vpop.xlane.xlu0 %213
    %v215 = vrot.slane %v214, 4
    %v216 = vadd.f32 %v214, %v215
    %v217 = vrot.slane %v216, 2
    %v218 = vadd.f32 %v216, %v217
    %v219 = vrot.slane %v218, 1
    %v220 = vadd.f32 %v218, %v219
    %s221 = vtos %v220
    %v222 = vrcp.pop 196.0
    %s223 = vtos %v222
    %s224 = smul.f32 %s210, %s223
    %v225 = vrcp.pop 196.0
    %s226 = vtos %v225
    %s227 = smul.f32 %s221, %s226
    %s228 = smul.f32 %s224, %s224
    %s229 = ssub.f32 %s227, %s228
    %s230 = smax.f32 %s229, 0.0
    %s231 = sadd.f32 %s230, 1e-05
    %v232 = vstv %s231
    %v233 = vrsqrt.pop %v232
    %s234 = vtos %v233
    %s235 = smul.f32 %s177, %s234
    %s236 = smul.f32 %s224, %s235
    %s237 = ssub.f32 %s178, %s236
    %v238 = vstv %s235
    %v239 = vmul.f32 %v199, %v238
    %241 = vrot.lane.b32.xlu0 %v239, 127
    %v242 = vpop.permute.xlu0 %241
    %v244 = vmax.f32 %v239, %v242
    %v245 = vstv %s237
    %v246 = vadd.f32 %v244, %v245
    %v247 = vmax.f32 %v246, 0.0
    %vm248 = vcmask 787456
    %249 = vst.msk [vmem:[#allocation2] sm:$0x3] %vm248, %v247
    %s250 = sld [smem:[#allocation9 + $0x4]]
    %s251 = sld [smem:[#allocation9 + $0x5]]
    %s252 = sld [smem:[#allocation9 + $0x6]]
    %s253 = sld [smem:[#allocation9 + $0x7]]
    %s254 = sld [smem:[#allocation9 + $0xd]]
    %s255 = sld [smem:[#allocation9 + $0x10]]
    %s256 = sld [smem:[#allocation9 + $0x13]]
    %v257 = vstv %s250
    %v258 = vmul.f32 %v167, %v257
    %v259 = vstv %s251
    %v260 = vmul.f32 %v170, %v259
    %v261 = vadd.f32 %v258, %v260
    %v262 = vstv %s252
    %v263 = vmul.f32 %v167, %v262
    %265 = vrot.lane.b32.xlu0 %v263, 127
    %v266 = vpop.permute.xlu0 %265
    %v268 = vadd.f32 %v261, %v266
    %v269 = vstv %s253
    %v270 = vmul.f32 %v170, %v269
    %272 = vrot.lane.b32.xlu0 %v270, 127
    %v273 = vpop.permute.xlu0 %272
    %v275 = vadd.f32 %v268, %v273
    %v276 = vstv %s254
    %v277 = vadd.f32 %v275, %v276
    %v278 = vsel %vm200, %v277, 0.0
    %279 = vadd.xlane.f32.xlu0 %v278
    %v280 = vpop.xlane.xlu0 %279
    %v281 = vrot.slane %v280, 4
    %v282 = vadd.f32 %v280, %v281
    %v283 = vrot.slane %v282, 2
    %v284 = vadd.f32 %v282, %v283
    %v285 = vrot.slane %v284, 1
    %v286 = vadd.f32 %v284, %v285
    %s287 = vtos %v286
    %v288 = vmul.f32 %v277, %v277
    %v289 = vsel %vm200, %v288, 0.0
    %290 = vadd.xlane.f32.xlu0 %v289
    %v291 = vpop.xlane.xlu0 %290
    %v292 = vrot.slane %v291, 4
    %v293 = vadd.f32 %v291, %v292
    %v294 = vrot.slane %v293, 2
    %v295 = vadd.f32 %v293, %v294
    %v296 = vrot.slane %v295, 1
    %v297 = vadd.f32 %v295, %v296
    %s298 = vtos %v297
    %v299 = vrcp.pop 196.0
    %s300 = vtos %v299
    %s301 = smul.f32 %s287, %s300
    %v302 = vrcp.pop 196.0
    %s303 = vtos %v302
    %s304 = smul.f32 %s298, %s303
    %s305 = smul.f32 %s301, %s301
    %s306 = ssub.f32 %s304, %s305
    %s307 = smax.f32 %s306, 0.0
    %s308 = sadd.f32 %s307, 1e-05
    %v309 = vstv %s308
    %v310 = vrsqrt.pop %v309
    %s311 = vtos %v310
    %s312 = smul.f32 %s255, %s311
    %s313 = smul.f32 %s301, %s312
    %s314 = ssub.f32 %s256, %s313
    %v315 = vstv %s312
    %v316 = vmul.f32 %v277, %v315
    %318 = vrot.lane.b32.xlu0 %v316, 127
    %v319 = vpop.permute.xlu0 %318
    %v321 = vmax.f32 %v316, %v319
    %v322 = vstv %s314
    %v323 = vadd.f32 %v321, %v322
    %v324 = vmax.f32 %v323, 0.0
    %325 = vst.msk [vmem:[#allocation2 + $0x2] sm:$0x3] %vm248, %v324
    %s326 = sld [smem:[#allocation9 + $0x8]]
    %s327 = sld [smem:[#allocation9 + $0x9]]
    %s328 = sld [smem:[#allocation9 + $0xa]]
    %s329 = sld [smem:[#allocation9 + $0xb]]
    %s330 = sld [smem:[#allocation9 + $0xe]]
    %s331 = sld [smem:[#allocation9 + $0x11]]
    %s332 = sld [smem:[#allocation9 + $0x14]]
    %v333 = vstv %s326
    %v334 = vmul.f32 %v167, %v333
    %v335 = vstv %s327
    %v336 = vmul.f32 %v170, %v335
    %v337 = vadd.f32 %v334, %v336
    %v338 = vstv %s328
    %v339 = vmul.f32 %v167, %v338
    %341 = vrot.lane.b32.xlu0 %v339, 127
    %v342 = vpop.permute.xlu0 %341
    %v344 = vadd.f32 %v337, %v342
    %v345 = vstv %s329
    %v346 = vmul.f32 %v170, %v345
    %348 = vrot.lane.b32.xlu0 %v346, 127
    %v349 = vpop.permute.xlu0 %348
    %v351 = vadd.f32 %v344, %v349
    %v352 = vstv %s330
    %v353 = vadd.f32 %v351, %v352
    %v354 = vsel %vm200, %v353, 0.0
    %355 = vadd.xlane.f32.xlu0 %v354
    %v356 = vpop.xlane.xlu0 %355
    %v357 = vrot.slane %v356, 4
    %v358 = vadd.f32 %v356, %v357
    %v359 = vrot.slane %v358, 2
    %v360 = vadd.f32 %v358, %v359
    %v361 = vrot.slane %v360, 1
    %v362 = vadd.f32 %v360, %v361
    %s363 = vtos %v362
    %v364 = vmul.f32 %v353, %v353
    %v365 = vsel %vm200, %v364, 0.0
    %366 = vadd.xlane.f32.xlu0 %v365
    %v367 = vpop.xlane.xlu0 %366
    %v368 = vrot.slane %v367, 4
    %v369 = vadd.f32 %v367, %v368
    %v370 = vrot.slane %v369, 2
    %v371 = vadd.f32 %v369, %v370
    %v372 = vrot.slane %v371, 1
    %v373 = vadd.f32 %v371, %v372
    %s374 = vtos %v373
    %v375 = vrcp.pop 196.0
    %s376 = vtos %v375
    %s377 = smul.f32 %s363, %s376
    %v378 = vrcp.pop 196.0
    %s379 = vtos %v378
    %s380 = smul.f32 %s374, %s379
    %s381 = smul.f32 %s377, %s377
    %s382 = ssub.f32 %s380, %s381
    %s383 = smax.f32 %s382, 0.0
    %s384 = sadd.f32 %s383, 1e-05
    %v385 = vstv %s384
    %v386 = vrsqrt.pop %v385
    %s387 = vtos %v386
    %s388 = smul.f32 %s331, %s387
    %s389 = smul.f32 %s377, %s388
    %s390 = ssub.f32 %s332, %s389
    %v391 = vstv %s388
    %v392 = vmul.f32 %v353, %v391
    %394 = vrot.lane.b32.xlu0 %v392, 127
    %v395 = vpop.permute.xlu0 %394
    %v397 = vmax.f32 %v392, %v395
    %v398 = vstv %s390
    %v399 = vadd.f32 %v397, %v398
    %v400 = vmax.f32 %v399, 0.0
    %401 = vst.msk [vmem:[#allocation2 + $0x4] sm:$0x3] %vm248, %v400
    %v402 = vld [vmem:[#allocation2] sm:$0x3f]
    %v404 = vcombine.high %v402, %v402
    %v406 = vunpack.c.l.s4 1983009808
    %v407 = vunpack.c.0.s8 %v406
    %v408 = vlaneseq
    %v409 = vshrl.u32 %v408, 7
    %v410 = vsub.s32 %v407, %v409
    %v411 = vrot.slane %v402, %v410
    %v413 = vunpack.c.l.s4 1983009808
    %v414 = vunpack.c.0.s8 %v413
    %v415 = vlaneseq
    %v416 = vshrl.u32 %v415, 7
    %v417 = vsub.s32 %v414, %v416
    %v418 = vrot.slane %v404, %v417
    %v419 = vcombine.high %v411, %v411
    %v423 = vpack.c.bf16 %v411, %v411
    %v424 = vpack.c.bf16 %v419, %v419
    %v425 = vpack.c.bf16 %v418, %v418
    %v426 = vld [vmem:[#allocation7] sm:$0xf]
    %v427 = vld [vmem:[#allocation7 + $0x4] sm:$0xf]
    %v428 = vld [vmem:[#allocation7 + $0x8] sm:$0xf]
    %v429 = vld [vmem:[#allocation7 + $0xc] sm:$0xf]
    %v430 = vld [vmem:[#allocation7 + $0x10] sm:$0xf]
    %v431 = vld [vmem:[#allocation7 + $0x14] sm:$0xf]
    %v432 = vld [vmem:[#allocation7 + $0x18] sm:$0xf]
    %v433 = vld [vmem:[#allocation7 + $0x1c] sm:$0xf]
    %v434 = vld [vmem:[#allocation7 + $0x20] sm:$0xf]
    %v435 = vld [vmem:[#allocation7 + $0x24] sm:$0xf]
    %v436 = vld [vmem:[#allocation7 + $0x28] sm:$0xf]
    %v437 = vld [vmem:[#allocation7 + $0x2c] sm:$0xf]
    %v438 = vld [vmem:[#allocation7 + $0x30] sm:$0xf]
    %v439 = vld [vmem:[#allocation7 + $0x34] sm:$0xf]
    %v440 = vld [vmem:[#allocation7 + $0x38] sm:$0xf]
    %v441 = vld [vmem:[#allocation7 + $0x3c] sm:$0xf]
    %v442 = vld [vmem:[#allocation7 + $0x40] sm:$0xf]
    %v443 = vld [vmem:[#allocation7 + $0x44] sm:$0xf]
    %v444 = vld [vmem:[#allocation7 + $0x48] sm:$0xf]
    %v445 = vld [vmem:[#allocation7 + $0x4c] sm:$0xf]
    %v446 = vld [vmem:[#allocation7 + $0x50] sm:$0xf]
    %v447 = vld [vmem:[#allocation7 + $0x54] sm:$0xf]
    %v448 = vld [vmem:[#allocation7 + $0x58] sm:$0xf]
    %v449 = vld [vmem:[#allocation7 + $0x5c] sm:$0xf]
    %v450 = vld [vmem:[#allocation7 + $0x60] sm:$0xf]
    %v451 = vld [vmem:[#allocation7 + $0x64] sm:$0xf]
    %v452 = vld [vmem:[#allocation7 + $0x68] sm:$0xf]
    %v453 = vld [vmem:[#allocation7 + $0x6c] sm:$0xf]
    %v454 = vld [vmem:[#allocation7 + $0x70] sm:$0xf]
    %v455 = vld [vmem:[#allocation7 + $0x74] sm:$0xf]
    %v456 = vld [vmem:[#allocation7 + $0x78] sm:$0xf]
    %v457 = vld [vmem:[#allocation7 + $0x7c] sm:$0xf]
    %v458 = vld [vmem:[#allocation7 + $0x80] sm:$0xf]
    %v459 = vld [vmem:[#allocation7 + $0x84] sm:$0xf]
    %v460 = vld [vmem:[#allocation7 + $0x88] sm:$0xf]
    %v461 = vld [vmem:[#allocation7 + $0x8c] sm:$0xf]
    %v462 = vld [vmem:[#allocation7 + $0x90] sm:$0xf]
    %v463 = vld [vmem:[#allocation7 + $0x94] sm:$0xf]
    %v464 = vld [vmem:[#allocation7 + $0x98] sm:$0xf]
    %v465 = vld [vmem:[#allocation7 + $0x9c] sm:$0xf]
    %v466 = vld [vmem:[#allocation7 + $0xa0] sm:$0xf]
    %v467 = vld [vmem:[#allocation7 + $0xa4] sm:$0xf]
    %v468 = vld [vmem:[#allocation7 + $0xa8] sm:$0xf]
    %v469 = vld [vmem:[#allocation7 + $0xac] sm:$0xf]
    %v470 = vld [vmem:[#allocation7 + $0xb0] sm:$0xf]
    %v471 = vld [vmem:[#allocation7 + $0xb4] sm:$0xf]
    %v472 = vld [vmem:[#allocation7 + $0xb8] sm:$0xf]
    %v473 = vld [vmem:[#allocation7 + $0xbc] sm:$0xf]
    %v474 = vld [vmem:[%s2] sm:$0x1]
    %v476 = vlaneseq
    %v477 = vshrl.u32 %v476, 7
    %v478 = vsub.s32 0, %v477
    %v479 = vrot.slane %v474, %v478
    %v529 = vunpack.c.l.b16 %v426
    %v530 = vunpack.c.l.b16 %v427
    %v531 = vunpack.c.l.b16 %v428
    %v532 = vunpack.c.l.b16 %v429
    %v533 = vunpack.c.l.b16 %v430
    %v534 = vunpack.c.l.b16 %v431
    %v535 = vunpack.c.l.b16 %v432
    %v536 = vunpack.c.l.b16 %v433
    %v537 = vunpack.c.l.b16 %v434
    %v538 = vunpack.c.l.b16 %v435
    %v539 = vunpack.c.l.b16 %v436
    %v540 = vunpack.c.l.b16 %v437
    %v541 = vunpack.c.l.b16 %v438
    %v542 = vunpack.c.l.b16 %v439
    %v543 = vunpack.c.l.b16 %v440
    %v544 = vunpack.c.l.b16 %v441
    %v545 = vunpack.c.l.b16 %v442
    %v546 = vunpack.c.l.b16 %v443
    %v547 = vunpack.c.l.b16 %v444
    %v548 = vunpack.c.l.b16 %v445
    %v549 = vunpack.c.l.b16 %v446
    %v550 = vunpack.c.l.b16 %v447
    %v551 = vunpack.c.l.b16 %v448
    %v552 = vunpack.c.l.b16 %v449
    %v553 = vunpack.c.l.b16 %v450
    %v554 = vunpack.c.l.b16 %v451
    %v555 = vunpack.c.l.b16 %v452
    %v556 = vunpack.c.l.b16 %v453
    %v557 = vunpack.c.l.b16 %v454
    %v558 = vunpack.c.l.b16 %v455
    %v559 = vunpack.c.l.b16 %v456
    %v560 = vunpack.c.l.b16 %v457
    %v561 = vunpack.c.l.b16 %v458
    %v562 = vunpack.c.l.b16 %v459
    %v563 = vunpack.c.l.b16 %v460
    %v564 = vunpack.c.l.b16 %v461
    %v565 = vunpack.c.l.b16 %v462
    %v566 = vunpack.c.l.b16 %v463
    %v567 = vunpack.c.l.b16 %v464
    %v568 = vunpack.c.l.b16 %v465
    %v569 = vunpack.c.l.b16 %v466
    %v570 = vunpack.c.l.b16 %v467
    %v571 = vunpack.c.l.b16 %v468
    %v572 = vunpack.c.l.b16 %v469
    %v573 = vunpack.c.l.b16 %v470
    %v574 = vunpack.c.l.b16 %v471
    %v575 = vunpack.c.l.b16 %v472
    %v576 = vunpack.c.l.b16 %v473
    %v577 = vpack.c.b16 %v530, %v529
    %v578 = vpack.c.b16 %v532, %v531
    %v579 = vpack.c.b16 %v534, %v533
    %v580 = vpack.c.b16 %v536, %v535
    %v581 = vpack.c.b16 %v538, %v537
    %v582 = vpack.c.b16 %v540, %v539
    %v583 = vpack.c.b16 %v542, %v541
    %v584 = vpack.c.b16 %v544, %v543
    %v585 = vpack.c.b16 %v546, %v545
    %v586 = vpack.c.b16 %v548, %v547
    %v587 = vpack.c.b16 %v550, %v549
    %v588 = vpack.c.b16 %v552, %v551
    %v589 = vpack.c.b16 %v554, %v553
    %v590 = vpack.c.b16 %v556, %v555
    %v591 = vpack.c.b16 %v558, %v557
    %v592 = vpack.c.b16 %v560, %v559
    %v593 = vpack.c.b16 %v562, %v561
    %v594 = vpack.c.b16 %v564, %v563
    %v595 = vpack.c.b16 %v566, %v565
    %v596 = vpack.c.b16 %v568, %v567
    %v597 = vpack.c.b16 %v570, %v569
    %v598 = vpack.c.b16 %v572, %v571
    %v599 = vpack.c.b16 %v574, %v573
    %v600 = vpack.c.b16 %v576, %v575
    %625 = vmatprep.subr.bf16.mxu0 0
    %626 = vmatpush1.bf16.msra.mxu0 %v577
    %627 = vmatprep.subr.bf16.mxu0 0
    %628 = vmatpush1.bf16.msra.mxu0 %v578
    %629 = vmatprep.subr.bf16.mxu0 0
    %630 = vmatpush1.bf16.msra.mxu0 %v579
    %631 = vmatprep.subr.bf16.mxu0 0
    %632 = vmatpush1.bf16.msra.mxu0 %v580
    %633 = vmatprep.subr.bf16.mxu0 0
    %634 = vmatpush1.bf16.msra.mxu0 %v581
    %635 = vmatprep.subr.bf16.mxu0 0
    %636 = vmatpush1.bf16.msra.mxu0 %v582
    %637 = vmatprep.subr.bf16.mxu0 0
    %638 = vmatpush1.bf16.msra.mxu0 %v583
    %639 = vmatprep.subr.bf16.mxu0 0
    %640 = vmatpush1.bf16.msra.mxu0 %v584
    %641 = vmatprep.subr.bf16.mxu0 0
    %642 = vmatpush1.bf16.msra.mxu0 %v585
    %643 = vmatprep.subr.bf16.mxu0 0
    %644 = vmatpush1.bf16.msra.mxu0 %v586
    %645 = vmatprep.subr.bf16.mxu0 0
    %646 = vmatpush1.bf16.msra.mxu0 %v587
    %647 = vmatprep.subr.bf16.mxu0 0
    %648 = vmatpush1.bf16.msra.mxu0 %v588
    %649 = vmatprep.subr.bf16.mxu0 0
    %650 = vmatpush1.bf16.msra.mxu0 %v589
    %651 = vmatprep.subr.bf16.mxu0 0
    %652 = vmatpush1.bf16.msra.mxu0 %v590
    %653 = vmatprep.subr.bf16.mxu0 0
    %654 = vmatpush1.bf16.msra.mxu0 %v591
    %655 = vmatprep.subr.bf16.mxu0 0
    %656 = vmatpush1.bf16.msra.mxu0 %v592
    %657 = vmatprep.mubr.bf16.mxu0 %v424
    %658 = vmatmul.mubr.bf16.gmra.mrb[0].mxu0 %v423
    %v659 = vpop.f32.mrb[0].mxu0
    %v660 = vadd.f32 %v479, %v659
    %v661 = vpop.f32.mrb[0].mxu0
    %v662 = vpop.f32.mrb[0].mxu0
    %v663 = vpop.f32.mrb[0].mxu0
    %664 = vdwg.mxu0
    %665 = vmatprep.subr.bf16.mxu0 0
    %666 = vmatpush1.bf16.msra.mxu0 %v593
    %667 = vmatprep.subr.bf16.mxu0 0
    %668 = vmatpush1.bf16.msra.mxu0 %v594
    %669 = vmatprep.subr.bf16.mxu0 0
    %670 = vmatpush1.bf16.msra.mxu0 %v595
    %671 = vmatprep.subr.bf16.mxu0 0
    %672 = vmatpush1.bf16.msra.mxu0 %v596
    %673 = vmatprep.subr.bf16.mxu0 0
    %674 = vmatpush1.bf16.msra.mxu0 %v597
    %675 = vmatprep.subr.bf16.mxu0 0
    %676 = vmatpush1.bf16.msra.mxu0 %v598
    %677 = vmatprep.subr.bf16.mxu0 0
    %678 = vmatpush1.bf16.msra.mxu0 %v599
    %679 = vmatprep.subr.bf16.mxu0 0
    %680 = vmatpush1.bf16.msra.mxu0 %v600
    %681 = vmatprep.subr.bf16.mxu0 0
    %682 = vmatpush1.bf16.msra.mxu0 0
    %683 = vmatprep.subr.bf16.mxu0 0
    %684 = vmatpush1.bf16.msra.mxu0 0
    %685 = vmatprep.subr.bf16.mxu0 0
    %686 = vmatpush1.bf16.msra.mxu0 0
    %687 = vmatprep.subr.bf16.mxu0 0
    %688 = vmatpush1.bf16.msra.mxu0 0
    %689 = vmatprep.subr.bf16.mxu0 0
    %690 = vmatpush1.bf16.msra.mxu0 0
    %691 = vmatprep.subr.bf16.mxu0 0
    %692 = vmatpush1.bf16.msra.mxu0 0
    %693 = vmatprep.subr.bf16.mxu0 0
    %694 = vmatpush1.bf16.msra.mxu0 0
    %695 = vmatprep.subr.bf16.mxu0 0
    %696 = vmatpush1.bf16.msra.mxu0 0
    %697 = vmatprep.mubr.bf16.mxu0 0
    %698 = vmatmul.mubr.bf16.gmra.mrb[0].mxu0 %v425
    %v699 = vpop.f32.mrb[0].mxu0
    %v700 = vadd.f32 %v660, %v699
    %v701 = vpop.f32.mrb[0].mxu0
    %v702 = vpop.f32.mrb[0].mxu0
    %v703 = vpop.f32.mrb[0].mxu0
    %704 = vdwg.mxu0
    %705 = vst [vmem:[#allocation10] sm:$0x3] %v700
    // Predicated region
    $region30: #{tpu_custom_call.1} parent=1 // pred_check
      _
    $region31: #{tpu_custom_call.1} parent=1 // pred_check_branch
      %707 = sbr.rel (0) target = $region33
    $region32: #{tpu_custom_call.1} parent=1 // pred_region
      %s709 = ssub.s32 32, 32
      %710 = vsyncadd [#allocation5], %s709
      %s712 = sshll.u32 [#allocation10], 4
      %s713 = int_to_ptr.vmem [resolvable:$true] %s712
      %715 = dma.vmem_to_hbm [thread:$0]  %s713, 32, %s4, [#allocation5]
    $region33: #{tpu_custom_call.1} parent=1 // pred_fallthru
      _
    // Predicated region
    $region34: #{tpu_custom_call.1} parent=1 // pred_check
      _
    $region35: #{tpu_custom_call.1} parent=1 // pred_check_branch
      %717 = sbr.rel (0) target = $region37
    $region36: #{tpu_custom_call.1} parent=1 // pred_region
      %718 = dma.done [#allocation5], 32
    $region37: #{tpu_custom_call.1} parent=1 // pred_fallthru
      _
    %719 = vsyncpa [#allocation4], 1
    %720 = vsyncpa [#allocation8], 1
    %721 = vsyncpa [#allocation5], 1
    %722 = vsyncpa [#allocation6], 1

</llo_original>
